<compile_context>
chip_gen: v7x
topology: tpu7x:2x2x1
jax: 0.10.0
libtpu: 0.0.40
codegen_flags: <defaults>
</compile_context>

<pallas_src>
import jax
import jax.numpy as jnp
from jax.experimental import pallas as pl
from jax.experimental.pallas import tpu as pltpu


_TARGET_BLOCK_BYTES = 4 * 1024 * 1024   # per-block budget (~16 MiB pipelined footprint)
_VMEM_LIMIT_BYTES = 32 * 1024 * 1024    # conservative: fits every generation incl. v7x


def _copy_kernel(x_ref, o_ref):
    # Channel shuffle is expressed by the BlockSpec index_maps; the body is a
    # pure copy (sublane = channels, lane = spatial) and runs at the HBM roofline.
    o_ref[...] = x_ref[...]


def _largest_divisor_leq(n, cap, multiple_of=1):
    best = None
    for d in range(1, n + 1):
        if n % d == 0 and d <= cap and d % multiple_of == 0:
            best = d
    return best


def _choose_tiles(cpg, hw, itemsize):
    """Pick (c_tile, hw_tile) with c_tile | cpg and hw_tile a 128-multiple divisor
    of hw, targeting ~_TARGET_BLOCK_BYTES per block; prefer whole spatial rows."""
    # Lane tile: keep whole HW rows unless a single 8-row slab blows the budget.
    if 8 * hw * itemsize <= _TARGET_BLOCK_BYTES:
        hw_tile = hw
    else:
        cap_chunks = max(1, _TARGET_BLOCK_BYTES // (8 * itemsize * 128))
        hw_tile = 128 * (_largest_divisor_leq(hw // 128, cap_chunks) or 1)
    # Channel (sublane) tile: as many channels as fit; prefer the full cpg extent,
    # then a multiple-of-8 divisor (dense sublanes), then the largest divisor.
    cap_c = max(1, _TARGET_BLOCK_BYTES // (hw_tile * itemsize))
    if cpg <= cap_c:
        c_tile = cpg
    else:
        c_tile = (_largest_divisor_leq(cpg, cap_c, multiple_of=8)
                  or _largest_divisor_leq(cpg, cap_c) or 1)
    return c_tile, hw_tile


def _shuffle_blocked(xf, B, groups, cpg, HW, dtype):
    """Fast path (HW % 128 == 0). xf: (B, groups, cpg, HW) -> (B, cpg, groups*HW)."""
    itemsize = jnp.dtype(dtype).itemsize
    c_tile, hw_tile = _choose_tiles(cpg, HW, itemsize)
    n_kc = cpg // c_tile
    n_t = HW // hw_tile
    # Batch outermost for a balanced megacore split on v7x; inner axes walk the
    # input contiguously.
    grid = (B, groups, n_kc, n_t)

    def in_index(b, g, kc, t):
        return (b, g, kc, t)

    def out_index(b, g, kc, t):
        # Output laid out as (B, cpg, groups*HW): lane-block offset g*HW + t*hw_tile
        # is block index g*n_t + t because hw_tile divides HW.
        return (b, kc, g * n_t + t)

    out = pl.pallas_call(
        _copy_kernel,
        out_shape=jax.ShapeDtypeStruct((B, cpg, groups * HW), dtype),
        grid=grid,
        in_specs=[pl.BlockSpec((None, None, c_tile, hw_tile), in_index)],
        out_specs=pl.BlockSpec((None, c_tile, hw_tile), out_index),
        compiler_params=pltpu.CompilerParams(
            dimension_semantics=("parallel",) * len(grid),
            vmem_limit_bytes=_VMEM_LIMIT_BYTES,
        ),
        # Pure memory traffic: read + write of the whole tensor, zero FLOPs.
        cost_estimate=pl.CostEstimate(
            flops=0,
            transcendentals=0,
            bytes_accessed=2 * B * groups * cpg * HW * itemsize,
        ),
    )(xf)
    return out


def _shuffle_rowcopy(xf, B, C, HW, groups, cpg, dtype):
    """Fallback for HW not a multiple of 128: one full spatial row per grid step."""
    itemsize = jnp.dtype(dtype).itemsize

    def in_index(b, c):
        return (b, (c % groups) * cpg + c // groups, 0)

    def out_index(b, c):
        return (b, c, 0)

    return pl.pallas_call(
        _copy_kernel,
        out_shape=jax.ShapeDtypeStruct((B, C, HW), dtype),
        grid=(B, C),
        in_specs=[pl.BlockSpec((None, 1, HW), in_index)],
        out_specs=pl.BlockSpec((None, 1, HW), out_index),
        compiler_params=pltpu.CompilerParams(
            dimension_semantics=("parallel", "parallel"),
            vmem_limit_bytes=_VMEM_LIMIT_BYTES,
        ),
        cost_estimate=pl.CostEstimate(
            flops=0,
            transcendentals=0,
            bytes_accessed=2 * B * C * HW * itemsize,
        ),
    )(xf)


def shuffle_layer(x, groups):
    """Pallas equivalent of ShuffleLayer(groups).forward(x); x is NCHW."""
    B, C, H, W = x.shape
    assert C % groups == 0, "num_channels must be divisible by groups"
    cpg = C // groups
    HW = H * W

    if HW % 128 == 0:
        xf = x.reshape(B, groups, cpg, HW)
        out = _shuffle_blocked(xf, B, groups, cpg, HW, x.dtype)
        return out.reshape(B, C, H, W)

    # Awkward spatial sizes (e.g. 56x56): correct full-row copies.
    xf = x.reshape(B, C, HW)
    out = _shuffle_rowcopy(xf, B, C, HW, groups, cpg, x.dtype)
    return out.reshape(B, C, H, W)


def shuffle_layer_ref(x, groups):
    # Pure-JAX reference mirroring the PyTorch forward exactly.
    B, C, H, W = x.shape
    cpg = C // groups
    y = x.reshape(B, groups, cpg, H, W)
    y = jnp.transpose(y, (0, 2, 1, 3, 4))
    return y.reshape(B, C, H, W)


if __name__ == "__main__":
    # ShuffleLayer has no learnable parameters; only the input is needed.
    key = jax.random.PRNGKey(0)
    B, C, H, W = 2, 4, 16, 16
    groups = 2
    x = jax.random.normal(key, (B, C, H, W), dtype=jnp.float32)

    y = jax.block_until_ready(shuffle_layer(x, groups))

    y_ref = shuffle_layer_ref(x, groups)
    assert y.shape == (B, C, H, W)
    # Pure permutation/copy -> must match bit-exactly.
    assert jnp.array_equal(y, y_ref), "Pallas channel shuffle mismatch vs reference"
    print("KERNEL_OK")
</pallas_src>

<mosaic_0001>
module attributes {stable_mosaic.version = 11 : i64} {
  func.func @_copy_kernel(%arg0: i32, %arg1: i32, %arg2: i32, %arg3: i32, %arg4: memref<1x1x2x256xf32, #tpu.memory_space<vmem>>, %arg5: memref<1x2x256xf32, #tpu.memory_space<vmem>>) attributes {dimension_semantics = [#tpu.dimension_semantics<parallel>, #tpu.dimension_semantics<parallel>, #tpu.dimension_semantics<parallel>, #tpu.dimension_semantics<parallel>], iteration_bounds = array<i64: 2, 2, 1, 1>, scalar_prefetch = 0 : i64, scratch_operands = 0 : i64, tpu.core_type = #tpu.core_type<tc>, window_params = [{transform_indices = @transform_0, window_bounds = array<i64: 1, 1, 2, 256>}, {transform_indices = @transform_1, window_bounds = array<i64: 1, 2, 256>}]} {
    %c0 = arith.constant 0 : index
    %c0_0 = arith.constant 0 : index
    %c0_1 = arith.constant 0 : index
    %c0_2 = arith.constant 0 : index
    %0 = vector.load %arg4[%c0, %c0_0, %c0_1, %c0_2] : memref<1x1x2x256xf32, #tpu.memory_space<vmem>>, vector<1x1x2x256xf32>
    %1 = vector.shape_cast %0 : vector<1x1x2x256xf32> to vector<2x256xf32>
    %c0_3 = arith.constant 0 : index
    %c0_4 = arith.constant 0 : index
    %c0_5 = arith.constant 0 : index
    %2 = vector.load %arg5[%c0_3, %c0_4, %c0_5] : memref<1x2x256xf32, #tpu.memory_space<vmem>>, vector<1x2x256xf32>
    %3 = vector.shape_cast %2 : vector<1x2x256xf32> to vector<2x256xf32>
    %4 = vector.shape_cast %1 : vector<2x256xf32> to vector<1x2x256xf32>
    tpu.vector_store %arg5[%c0_3, %c0_4, %c0_5], %4 {strides = array<i32>} : memref<1x2x256xf32, #tpu.memory_space<vmem>>, vector<1x2x256xf32>,
    return
  }
  func.func @transform_0(%arg0: i32, %arg1: i32, %arg2: i32, %arg3: i32) -> (i32, i32, i32, i32) {
    %c0_i32 = arith.constant 0 : i32
    return %arg0, %arg1, %arg2, %arg3 : i32, i32, i32, i32
  }
  func.func @transform_1(%arg0: i32, %arg1: i32, %arg2: i32, %arg3: i32) -> (i32, i32, i32) {
    %c1_i32 = arith.constant 1 : i32
    %0 = arith.muli %arg1, %c1_i32 : i32
    %1 = arith.addi %0, %arg3 : i32
    %c0_i32 = arith.constant 0 : i32
    return %arg0, %arg2, %1 : i32, i32, i32
  }
}

</mosaic_0001>

<llo_original>
// kernel: tpu_custom_call.1
$region0: #{tpu_custom_call.1}
  #allocation0 [shape = 'u32[]', space=smem, size = 0x4, offset = 0x4, fixed_abs, tag = 'smem constant byte address 0x4 - core index']
  #allocation1 [shape = 'u32[144,128]{1,0:T(1,128)}', space=vmem, size = 0x12000, scoped, tag = 'internal scratch']
  %s0 = inlined_call_operand.hbm [shape: f32[2,2,2,256], index: 0, kind: input, shape index: {}]
  %s1 = inlined_call_operand.hbm [shape: f32[2,2,512], index: 1, kind: output, shape index: {}]
  %s2 = sld [smem:[#allocation0]]
  $region41: #{tpu_custom_call.1} parent=0
    _
  %s4 = ssub.s32 1, %s2
  %s5 = scalar_select 0, %s4, %s2
  $region1: #{tpu_custom_call.1} parent=0
    #allocation2 [shape = 'u8[4096]{0}', space=vmem, size = 0x1000, scoped, tag = 'input window, operand 0']
    #allocation3 [shape = 's32[2]{0}', space=sflag, size = 0x8, scoped, tag = 'scoped memory for tpu_custom_call.1']
    #allocation4 [shape = 's32[2]{0}', space=sflag, size = 0x8, scoped, tag = 'scoped memory for tpu_custom_call.1']
    #allocation5 [shape = 'u8[4096]{0}', space=vmem, size = 0x1000, scoped, tag = 'output window, operand 0']
    %6 = vsyncpa [#allocation3], 0
    %s7 = scalar_lea.sflag [#allocation3], 1
    %8 = vsyncpa %s7, 0
    %9 = vsyncpa [#allocation4], 0
    %s10 = scalar_lea.sflag [#allocation4], 1
    %11 = vsyncpa %s10, 0
    loop: start=0, step=1, limit=6
    $region2: #{tpu_custom_call.1} parent=1 // loop_pre_header
      _
    $region3: #{tpu_custom_call.1} parent=1 // loop_header
      %s13 = sphi 0, %s17
      %p14 = scmp.ge.s32.totalorder %s13, 6
      %s20 = sphi 0, %s46
      %s21 = sphi 0, %s42
      %s22 = sphi 0, %s38
      %s23 = sphi 0, %s34
      %s24 = sphi 0, %s20
      %s25 = sphi 0, %s21
      %s26 = sphi 0, %s22
      %s27 = sphi 0, %s23
      %s28 = sphi 0, %s24
      %s29 = sphi 0, %s25
      %s30 = sphi 0, %s26
      %s31 = sphi 0, %s27
      %s55 = sphi 0, %s57
      %s58 = sphi 0, %s55
      %s59 = sphi 0, %s58
      %s75 = sphi 0, %s59
      %s87 = sphi 0, %s89
      %s90 = sphi 0, %s87
      %s91 = sphi 0, %s90
      %s107 = sphi 0, %s91
    $region4: #{tpu_custom_call.1} parent=1 // loop_header_branch
      %16 = sbr.rel (%p14) target = $region8
    $region5: #{tpu_custom_call.1} parent=1 // loop_body
      %s18 = ssub.s32 %s13, 1
      %s19 = ssub.s32 %s13, 2
      %s32 = sadd.s32 1, %s23
      %p33 = scmp.ge.s32.totalorder %s32, 1
      %s34 = scalar_select %p33, 0, %s32
      %s35 = sadd.s32 1, %s22
      %s36 = scalar_select %p33, %s35, %s22
      %p37 = scmp.ge.s32.totalorder %s36, 1
      %s38 = scalar_select %p37, 0, %s36
      %s39 = sadd.s32 1, %s21
      %s40 = scalar_select %p37, %s39, %s21
      %p41 = scmp.ge.s32.totalorder %s40, 2
      %s42 = scalar_select %p41, 0, %s40
      %s43 = sadd.s32 1, %s20
      %s44 = scalar_select %p41, %s43, %s20
      %p45 = scmp.ge.s32.totalorder %s44, 2
      %s46 = scalar_select %p45, 0, %s44
      %s47 = ssub.s32 %s20, %s46
      %s48 = ssub.s32 %s21, %s42
      %s49 = sor.u32 %s47, %s48
      %s50 = ssub.s32 %s22, %s38
      %s51 = sor.u32 %s49, %s50
      %s52 = ssub.s32 %s23, %s34
      %s53 = sor.u32 %s51, %s52
      %p54 = scmp.eq.s32.totalorder %s53, 0
      %s56 = sadd.s32 %s55, 1
      %s57 = scalar_select %p54, %s55, %s56
      %p60 = pneg %p54
      %p61 = scmp.eq.s32.totalorder %s13, 3
      %p62 = por %p60, %p61
      %p63 = scmp.ne.s32.totalorder %s55, %s58
      %p64 = scmp.eq.s32.totalorder %s13, 0
      %p65 = por %p63, %p64
      %p66 = scmp.ne.s32.totalorder %s55, %s58
      %p67 = scmp.eq.s32.totalorder %s18, 3
      %p68 = por %p66, %p67
      %p69 = scmp.ne.s32.totalorder %s58, %s59
      %p70 = scmp.eq.s32.totalorder %s18, 0
      %p71 = por %p69, %p70
      %p72 = scmp.ne.s32.totalorder %s58, %s59
      %p73 = scmp.eq.s32.totalorder %s19, 3
      %p74 = por %p72, %p73
      %p76 = scmp.ne.s32.totalorder %s59, %s75
      %p77 = scmp.eq.s32.totalorder %s19, 0
      %p78 = por %p76, %p77
      %s79 = sadd.s32 %s21, %s23
      %s80 = sadd.s32 %s42, %s34
      %s81 = ssub.s32 %s20, %s46
      %s82 = ssub.s32 %s22, %s38
      %s83 = sor.u32 %s81, %s82
      %s84 = ssub.s32 %s79, %s80
      %s85 = sor.u32 %s83, %s84
      %p86 = scmp.eq.s32.totalorder %s85, 0
      %s88 = sadd.s32 %s87, 1
      %s89 = scalar_select %p86, %s87, %s88
      %p92 = pneg %p86
      %p93 = scmp.eq.s32.totalorder %s13, 3
      %p94 = por %p92, %p93
      %p95 = scmp.ne.s32.totalorder %s87, %s90
      %p96 = scmp.eq.s32.totalorder %s13, 0
      %p97 = por %p95, %p96
      %p98 = scmp.ne.s32.totalorder %s87, %s90
      %p99 = scmp.eq.s32.totalorder %s18, 3
      %p100 = por %p98, %p99
      %p101 = scmp.ne.s32.totalorder %s90, %s91
      %p102 = scmp.eq.s32.totalorder %s18, 0
      %p103 = por %p101, %p102
      %p104 = scmp.ne.s32.totalorder %s90, %s91
      %p105 = scmp.eq.s32.totalorder %s19, 3
      %p106 = por %p104, %p105
      %p108 = scmp.ne.s32.totalorder %s91, %s107
      %p109 = scmp.eq.s32.totalorder %s19, 0
      %p110 = por %p108, %p109
      %p111 = scmp.le.s32.totalorder 1, %s13
      %p112 = scmp.lt.s32.totalorder %s13, 5
      %p113 = pnand %p111, %p112
      %p114 = pneg %p113
      // Predicated region
      $region9: #{tpu_custom_call.1} parent=5 // pred_check
        _
      $region10: #{tpu_custom_call.1} parent=5 // pred_check_branch
        %116 = sbr.rel (%p113) target = $region12
      $region11: #{tpu_custom_call.1} parent=5 // pred_region
        %s117 = ssub.s32 %s13, 1
      $region12: #{tpu_custom_call.1} parent=5 // pred_fallthru
        _
      %p118 = scmp.lt.s32.totalorder %s13, 4
      // Predicated region
      $region13: #{tpu_custom_call.1} parent=5 // pred_check
        %p119 = pneg %p118
      $region14: #{tpu_custom_call.1} parent=5 // pred_check_branch
        %121 = sbr.rel (%p119) target = $region16
      $region15: #{tpu_custom_call.1} parent=5 // pred_region
        // Predicated region
        $region17: #{tpu_custom_call.1} parent=15 // pred_check
          %p122 = pneg %p65
        $region18: #{tpu_custom_call.1} parent=15 // pred_check_branch
          %124 = sbr.rel (%p122) target = $region20
        $region19: #{tpu_custom_call.1} parent=15 // pred_region
          %s125 = sand.u32 %s55, 1
          %s126 = scalar_lea.sflag [#allocation3], %s125
          %s127 = sand.u32 %s55, 1
          %s128 = smul.addr %s127, 4
          %s129 = scalar_lea.vmem [#allocation2], %s128
          %s130 = smul.u32 2, %s23
          %s132 = ssub.s32 64, 64
          %133 = vsyncadd %s126, %s132
          %s134 = smul.addr %s22, 2
          %s135 = sadd.s32 %s130, %s134
          %s136 = smul.addr %s21, 2
          %s137 = sadd.s32 %s135, %s136
          %s138 = smul.addr %s20, 4
          %s139 = sadd.s32 %s137, %s138
          %s140 = smul.addr %s139, 32
          %s141 = scalar_lea.hbm %s0, %s140
          %s143 = sshll.u32 %s129, 4
          %s144 = int_to_ptr.vmem [resolvable:$true] %s143
          %146 = dma.hbm_to_vmem [thread:$0]  %s141, 64, %s144, %s126
        $region20: #{tpu_custom_call.1} parent=15 // pred_fallthru
          _
      $region16: #{tpu_custom_call.1} parent=5 // pred_fallthru
        _
      %p147 = scmp.le.s32.totalorder 1, %s13
      %p148 = scmp.lt.s32.totalorder %s13, 5
      %p149 = pnand %p147, %p148
      %p150 = pneg %p149
      // Predicated region
      $region21: #{tpu_custom_call.1} parent=5 // pred_check
        _
      $region22: #{tpu_custom_call.1} parent=5 // pred_check_branch
        %152 = sbr.rel (%p149) target = $region24
      $region23: #{tpu_custom_call.1} parent=5 // pred_region
        %s153 = ssub.s32 %s13, 1
        %s154 = sand.u32 %s58, 1
        %s155 = scalar_lea.sflag [#allocation3], %s154
        %s156 = sand.u32 %s58, 1
        %s157 = smul.addr %s156, 4
        %s158 = scalar_lea.vmem [#allocation2], %s157
        // Predicated region
        $region25: #{tpu_custom_call.1} parent=23 // pred_check
          %p159 = pneg %p71
        $region26: #{tpu_custom_call.1} parent=23 // pred_check_branch
          %161 = sbr.rel (%p159) target = $region28
        $region27: #{tpu_custom_call.1} parent=23 // pred_region
          %162 = dma.done %s155, 64
        $region28: #{tpu_custom_call.1} parent=23 // pred_fallthru
          _
        %s163 = sand.u32 %s58, 1
        %s164 = scalar_lea.sflag [#allocation3], %s163
        %s165 = sand.u32 %s58, 1
        %s166 = smul.addr %s165, 4
        %s167 = scalar_lea.vmem [#allocation2], %s166
        %p168 = pneg %p71
        %p169 = pneg %p68
        %p170 = pneg %p103
        %p171 = pneg %p100
        %s172 = sand.u32 %s90, 1
        %s173 = scalar_lea.sflag [#allocation4], %s172
        %s174 = sand.u32 %s90, 1
        %s175 = smul.addr %s174, 4
        %s176 = scalar_lea.vmem [#allocation5], %s175
        %s177 = smul.u32 2, %s27
        %s178 = sadd.s32 %s25, %s27
        %s179 = smul.u32 2, %s178
        %v180 = vld [vmem:[%s158] sm:$0xf]
        %181 = vst [vmem:[%s176] sm:$0xf] %v180
        %s182 = sand.u32 %s90, 1
        %s183 = scalar_lea.sflag [#allocation4], %s182
        %s184 = sand.u32 %s90, 1
        %s185 = smul.addr %s184, 4
        %s186 = scalar_lea.vmem [#allocation5], %s185
        // Predicated region
        $region29: #{tpu_custom_call.1} parent=23 // pred_check
          %p187 = pneg %p100
        $region30: #{tpu_custom_call.1} parent=23 // pred_check_branch
          %189 = sbr.rel (%p187) target = $region32
        $region31: #{tpu_custom_call.1} parent=23 // pred_region
          %s190 = sadd.s32 %s25, %s27
          %s191 = smul.u32 2, %s190
          %s193 = ssub.s32 64, 64
          %194 = vsyncadd %s183, %s193
          %s195 = smul.addr %s26, 4
          %s196 = sadd.s32 %s191, %s195
          %s197 = smul.addr %s24, 4
          %s198 = sadd.s32 %s196, %s197
          %s199 = smul.addr %s198, 32
          %s200 = scalar_lea.hbm %s1, %s199
          %s202 = sshll.u32 %s186, 4
          %s203 = int_to_ptr.vmem [resolvable:$true] %s202
          %205 = dma.vmem_to_hbm [thread:$0]  %s203, 64, %s200, %s183
        $region32: #{tpu_custom_call.1} parent=23 // pred_fallthru
          _
      $region24: #{tpu_custom_call.1} parent=5 // pred_fallthru
        _
      %p206 = scmp.le.s32.totalorder 2, %s13
      // Predicated region
      $region33: #{tpu_custom_call.1} parent=5 // pred_check
        %p207 = pneg %p206
      $region34: #{tpu_custom_call.1} parent=5 // pred_check_branch
        %209 = sbr.rel (%p207) target = $region36
      $region35: #{tpu_custom_call.1} parent=5 // pred_region
        %s210 = ssub.s32 %s13, 2
        // Predicated region
        $region37: #{tpu_custom_call.1} parent=35 // pred_check
          %p211 = pneg %p106
        $region38: #{tpu_custom_call.1} parent=35 // pred_check_branch
          %213 = sbr.rel (%p211) target = $region40
        $region39: #{tpu_custom_call.1} parent=35 // pred_region
          %s214 = sand.u32 %s91, 1
          %s215 = scalar_lea.sflag [#allocation4], %s214
          %s216 = sand.u32 %s91, 1
          %s217 = smul.addr %s216, 4
          %s218 = scalar_lea.vmem [#allocation5], %s217
          %219 = dma.done %s215, 64
        $region40: #{tpu_custom_call.1} parent=35 // pred_fallthru
          _
      $region36: #{tpu_custom_call.1} parent=5 // pred_fallthru
        _
    $region6: #{tpu_custom_call.1} parent=1 // loop_footer
      %s17 = sadd.s32 1, %s13
    $region7: #{tpu_custom_call.1} parent=1 // loop_footer_branch
      %12 = sbr.rel target = $region3
    $region8: #{tpu_custom_call.1} parent=1 // loop_exit
      _
    %220 = vsyncpa [#allocation3], 1
    %s221 = scalar_lea.sflag [#allocation3], 1
    %222 = vsyncpa %s221, 1
    %223 = vsyncpa [#allocation4], 1
    %s224 = scalar_lea.sflag [#allocation4], 1
    %225 = vsyncpa %s224, 1

</llo_original>
